<compile_context>
chip_gen: v7x
topology: tpu7x:2x2x1
jax: 0.10.0
libtpu: 0.0.40
codegen_flags: <defaults>
</compile_context>

<pallas_src>
import jax
import jax.numpy as jnp
from jax.experimental import pallas as pl
from jax.experimental.pallas import tpu as pltpu


def graph_agg_kernel(x_ref, wt_ref, b_ref, o_ref):
    """One grid step handles a (TB, N, H) tile of batch elements.

    x_ref : (TB, N, H)   batch tile of node features
    wt_ref: (H, U_pad)   transposed, lane-padded weight (same block every step)
    b_ref : (1, U_pad)   lane-padded bias
    o_ref : (TB, U_pad)  output tile for this grid step (block-indexed)
    """
    tb, n, h = x_ref.shape
    x2 = x_ref[...].reshape(tb * n, h)                      # fold B into MXU M-dim
    z = jnp.dot(x2, wt_ref[...],
                preferred_element_type=jnp.float32)         # (TB*N, U_pad)
    z = z + b_ref[...]                                      # broadcast bias
    # sigmoid(z) * tanh(z) == (1 - t) / (1 + t*t)  with  t = exp(-z)
    # (one EUP exp + one approx EUP reciprocal; rest is VALU work)
    t = jnp.exp(-z)
    y = (1.0 - t) * pl.reciprocal(1.0 + t * t, approx=True)
    r = jnp.sum(y.reshape(tb, n, -1), axis=1)               # reduce over nodes N
    # TODO(synk): dropout omitted (identity at inference; no RNG dropout here).
    o_ref[...] = jnp.tanh(r).astype(o_ref.dtype)


def graph_aggregation(x, weight, bias, *, tb=None):
    """x: (B, N, H) f32, weight: (U, H) f32, bias: (U,) f32 -> (B, U) f32."""
    B, N, H = x.shape
    U = weight.shape[0]

    # ---- lane-pad the unit axis to a full 128-lane tile (dense stores) ----
    U_pad = pl.cdiv(U, 128) * 128
    wt = jnp.zeros((H, U_pad), x.dtype).at[:, :U].set(weight.T)   # (H, U_pad)
    b2 = jnp.zeros((1, U_pad), x.dtype).at[:, :U].set(bias[None, :])

    # ---- pick batch tile TB: sublane-aligned (mult. of 8), TB*N >= 256 to
    #      fill the v6e/v7x MXU (128 already fills v5e), capped by a VMEM
    #      budget for the double-buffered x tile and by the (padded) batch ----
    if tb is None:
        tb = 8
        while tb * N < 256:
            tb *= 2
        vmem_budget = 8 * 1024 * 1024                 # bytes for 2x input buffers
        max_tb = max(8, vmem_budget // (2 * N * H * 4) // 8 * 8)
        tb = min(tb, max_tb)
        tb = min(tb, pl.cdiv(B, 8) * 8)               # don't exceed padded batch
    n_tiles = pl.cdiv(B, tb)
    B_pad = n_tiles * tb
    if B_pad != B:
        x = jnp.pad(x, ((0, B_pad - B), (0, 0), (0, 0)))   # zero rows, sliced off

    # TODO(synk): for very large N*H, add an N-reduction grid axis with a
    # (TB, U_pad) f32 VMEM accumulator and pl.when init/finalize instead of
    # loading all nodes in one tile.
    out = pl.pallas_call(
        graph_agg_kernel,
        out_shape=jax.ShapeDtypeStruct((B_pad, U_pad), jnp.float32),
        grid_spec=pltpu.PrefetchScalarGridSpec(
            num_scalar_prefetch=0,
            grid=(n_tiles,),
            in_specs=[
                pl.BlockSpec((tb, N, H), lambda i: (i, 0, 0)),   # batch tile
                pl.BlockSpec((H, U_pad), lambda i: (0, 0)),      # full weight
                pl.BlockSpec((1, U_pad), lambda i: (0, 0)),      # bias
            ],
            out_specs=pl.BlockSpec((tb, U_pad), lambda i: (i, 0)),
        ),
        compiler_params=pltpu.CompilerParams(
            dimension_semantics=("parallel",)),        # shard tiles over v7x TCs
    )(x, wt, b2)
    return out[:B, :U]


def graph_aggregation_ref(x, weight, bias):
    z = jnp.einsum("bnh,uh->bnu", x, weight) + bias
    y = jax.nn.sigmoid(z) * jnp.tanh(z)
    return jnp.tanh(jnp.sum(y, axis=1))


if __name__ == "__main__":
    # small shapes consistent with the module: batch=2, nodes=8, hidden=32, units=16
    B, N, H, U = 2, 8, 32, 16
    key = jax.random.PRNGKey(0)
    kx, kw, kb = jax.random.split(key, 3)

    x = jax.random.normal(kx, (B, N, H), dtype=jnp.float32)
    # deterministic parameter init (synthetic, not a checkpoint load)
    weight = jax.random.normal(kw, (U, H), dtype=jnp.float32) * 0.1
    bias = jax.random.normal(kb, (U,), dtype=jnp.float32) * 0.1

    out = graph_aggregation(x, weight, bias)
    out = jax.block_until_ready(out)

    ref = graph_aggregation_ref(x, weight, bias)
    assert out.shape == (B, U)
    # tolerance loosened slightly (2e-3) because the kernel uses the EUP
    # approximate reciprocal (~2^-12 relative error) per the perf review.
    assert jnp.allclose(out, ref, atol=2e-3, rtol=2e-3), "mismatch vs JAX reference"

    print("KERNEL_OK")
</pallas_src>

<mosaic_0001>
module attributes {stable_mosaic.version = 11 : i64} {
  func.func @graph_agg_kernel(%arg0: i32, %arg1: memref<8x8x32xf32, #tpu.memory_space<vmem>>, %arg2: memref<32x128xf32, #tpu.memory_space<vmem>>, %arg3: memref<1x128xf32, #tpu.memory_space<vmem>>, %arg4: memref<8x128xf32, #tpu.memory_space<vmem>>) attributes {dimension_semantics = [#tpu.dimension_semantics<parallel>], iteration_bounds = array<i64: 1>, scalar_prefetch = 0 : i64, scratch_operands = 0 : i64, tpu.core_type = #tpu.core_type<tc>, window_params = [{transform_indices = @transform_0, window_bounds = array<i64: 8, 8, 32>}, {pipeline_mode = #tpu.pipeline_mode<synchronous>, transform_indices = @transform_1, window_bounds = array<i64: 32, 128>}, {pipeline_mode = #tpu.pipeline_mode<synchronous>, transform_indices = @transform_2, window_bounds = array<i64: 1, 128>}, {transform_indices = @transform_3, window_bounds = array<i64: 8, 128>}]} {
    %c0 = arith.constant 0 : index
    %c0_0 = arith.constant 0 : index
    %c0_1 = arith.constant 0 : index
    %0 = vector.load %arg1[%c0, %c0_0, %c0_1] : memref<8x8x32xf32, #tpu.memory_space<vmem>>, vector<8x8x32xf32>
    %1 = vector.shape_cast %0 : vector<8x8x32xf32> to vector<64x32xf32>
    %c0_2 = arith.constant 0 : index
    %c0_3 = arith.constant 0 : index
    %2 = vector.load %arg2[%c0_2, %c0_3] : memref<32x128xf32, #tpu.memory_space<vmem>>, vector<32x128xf32>
    %cst = arith.constant dense<0.000000e+00> : vector<64x128xf32>
    %3 = tpu.matmul %1, %2, %cst {dimension_numbers = #tpu.dot_dimension_numbers<[1], [0], [0], [1], [0, 0, 1, 1], [], []>} : vector<64x32xf32>, vector<32x128xf32>, vector<64x128xf32> -> vector<64x128xf32>
    %c0_4 = arith.constant 0 : index
    %c0_5 = arith.constant 0 : index
    %4 = vector.load %arg3[%c0_4, %c0_5] : memref<1x128xf32, #tpu.memory_space<vmem>>, vector<1x128xf32>
    %5 = vector.broadcast %4 : vector<1x128xf32> to vector<64x128xf32>
    %6 = arith.addf %3, %5 : vector<64x128xf32>
    %cst_6 = arith.constant 0.000000e+00 : f32
    %7 = vector.broadcast %cst_6 : f32 to vector<64x128xf32>
    %8 = arith.subf %7, %6 : vector<64x128xf32>
    %9 = math.exp %8 : vector<64x128xf32>
    %cst_7 = arith.constant 1.000000e+00 : f32
    %10 = vector.broadcast %cst_7 : f32 to vector<64x128xf32>
    %11 = arith.subf %10, %9 : vector<64x128xf32>
    %12 = arith.mulf %9, %9 : vector<64x128xf32>
    %cst_8 = arith.constant 1.000000e+00 : f32
    %13 = vector.broadcast %cst_8 : f32 to vector<64x128xf32>
    %14 = arith.addf %13, %12 : vector<64x128xf32>
    %15 = tpu.reciprocal %14 {approx = true} : vector<64x128xf32> -> vector<64x128xf32>
    %16 = arith.mulf %11, %15 : vector<64x128xf32>
    %17 = vector.shape_cast %16 : vector<64x128xf32> to vector<8x8x128xf32>
    %cst_9 = arith.constant dense<0.000000e+00> : vector<8x128xf32>
    %18 = vector.multi_reduction <add>, %17, %cst_9 [1] : vector<8x8x128xf32> to vector<8x128xf32>
    %19 = math.tanh %18 : vector<8x128xf32>
    %c0_10 = arith.constant 0 : index
    %c0_11 = arith.constant 0 : index
    %20 = vector.load %arg4[%c0_10, %c0_11] : memref<8x128xf32, #tpu.memory_space<vmem>>, vector<8x128xf32>
    tpu.vector_store %arg4[%c0_10, %c0_11], %19 {strides = array<i32>} : memref<8x128xf32, #tpu.memory_space<vmem>>, vector<8x128xf32>,
    return
  }
  func.func @transform_0(%arg0: i32) -> (i32, i32, i32) {
    %c0_i32 = arith.constant 0 : i32
    %c0_i32_0 = arith.constant 0 : i32
    %c0_i32_1 = arith.constant 0 : i32
    return %arg0, %c0_i32, %c0_i32_0 : i32, i32, i32
  }
  func.func @transform_1(%arg0: i32) -> (i32, i32) {
    %c0_i32 = arith.constant 0 : i32
    %c0_i32_0 = arith.constant 0 : i32
    %c0_i32_1 = arith.constant 0 : i32
    return %c0_i32, %c0_i32_0 : i32, i32
  }
  func.func @transform_2(%arg0: i32) -> (i32, i32) {
    %c0_i32 = arith.constant 0 : i32
    %c0_i32_0 = arith.constant 0 : i32
    %c0_i32_1 = arith.constant 0 : i32
    return %c0_i32, %c0_i32_0 : i32, i32
  }
  func.func @transform_3(%arg0: i32) -> (i32, i32) {
    %c0_i32 = arith.constant 0 : i32
    %c0_i32_0 = arith.constant 0 : i32
    return %arg0, %c0_i32 : i32, i32
  }
}

</mosaic_0001>

<llo_original>
// kernel: tpu_custom_call.1
$region0: #{tpu_custom_call.1}
  #allocation0 [shape = 'u32[]', space=smem, size = 0x4, offset = 0x4, fixed_abs, tag = 'smem constant byte address 0x4 - core index']
  #allocation1 [shape = 'u32[144,128]{1,0:T(1,128)}', space=vmem, size = 0x12000, scoped, tag = 'internal scratch']
  %s0 = inlined_call_operand.hbm [shape: f32[8,8,32], index: 0, kind: input, shape index: {}]
  %s1 = inlined_call_operand.hbm [shape: f32[32,128], index: 1, kind: input, shape index: {}]
  %s2 = inlined_call_operand.vmem [shape: f32[1,128], index: 2, kind: input, shape index: {}]
  %s3 = inlined_call_operand.hbm [shape: f32[8,128], index: 3, kind: output, shape index: {}]
  %s4 = sld [smem:[#allocation0]]
  $region30: #{tpu_custom_call.1} parent=0
    _
  %s6 = ssub.s32 1, %s4
  %s7 = scalar_select 0, %s6, %s4
  $region1: #{tpu_custom_call.1} parent=0
    #allocation2 [shape = 'u8[32768]{0}', space=vmem, size = 0x8000, scoped, tag = 'input window, operand 0, single buffered']
    #allocation3 [shape = 's32[1]{0}', space=sflag, size = 0x4, scoped, tag = 'scoped memory for tpu_custom_call.1']
    #allocation4 [shape = 's32[1]{0}', space=sflag, size = 0x4, scoped, tag = 'scoped memory for tpu_custom_call.1']
    #allocation5 [shape = 'u8[16384]{0}', space=vmem, size = 0x4000, scoped, tag = 'input window, operand 1, single buffered']
    #allocation6 [shape = 's32[1]{0}', space=sflag, size = 0x4, scoped, tag = 'scoped memory for tpu_custom_call.1']
    #allocation7 [shape = 'u8[4096]{0}', space=vmem, size = 0x1000, scoped, tag = 'output window, operand 0, single buffered']
    %8 = vsyncpa [#allocation3], 0
    %9 = vsyncpa [#allocation6], 0
    %10 = vsyncpa [#allocation4], 0
    // Predicated region
    $region2: #{tpu_custom_call.1} parent=1 // pred_check
      _
    $region3: #{tpu_custom_call.1} parent=1 // pred_check_branch
      %12 = sbr.rel (0) target = $region5
    $region4: #{tpu_custom_call.1} parent=1 // pred_region
      %s14 = ssub.s32 1024, 1024
      %15 = vsyncadd [#allocation3], %s14
      %s16 = sshll.u32 [#allocation2], 4
      %s17 = int_to_ptr.vmem [resolvable:$true] %s16
      %22 = dma.hbm_to_vmem [thread:$0]  %s0, 1024, %s17, [#allocation3], 128, 128, 8
    $region5: #{tpu_custom_call.1} parent=1 // pred_fallthru
      _
    // Predicated region
    $region6: #{tpu_custom_call.1} parent=1 // pred_check
      _
    $region7: #{tpu_custom_call.1} parent=1 // pred_check_branch
      %24 = sbr.rel (0) target = $region9
    $region8: #{tpu_custom_call.1} parent=1 // pred_region
      %s26 = ssub.s32 512, 512
      %27 = vsyncadd [#allocation6], %s26
      %s28 = sshll.u32 [#allocation5], 4
      %s29 = int_to_ptr.vmem [resolvable:$true] %s28
      %34 = dma.hbm_to_vmem [thread:$0]  %s1, 512, %s29, [#allocation6], 128, 128, 8
    $region9: #{tpu_custom_call.1} parent=1 // pred_fallthru
      _
    // Predicated region
    $region10: #{tpu_custom_call.1} parent=1 // pred_check
      _
    $region11: #{tpu_custom_call.1} parent=1 // pred_check_branch
      %36 = sbr.rel (0) target = $region13
    $region12: #{tpu_custom_call.1} parent=1 // pred_region
      _
    $region13: #{tpu_custom_call.1} parent=1 // pred_fallthru
      _
    // Predicated region
    $region14: #{tpu_custom_call.1} parent=1 // pred_check
      _
    $region15: #{tpu_custom_call.1} parent=1 // pred_check_branch
      %38 = sbr.rel (0) target = $region17
    $region16: #{tpu_custom_call.1} parent=1 // pred_region
      %39 = dma.done [#allocation3], 1024
    $region17: #{tpu_custom_call.1} parent=1 // pred_fallthru
      _
    // Predicated region
    $region18: #{tpu_custom_call.1} parent=1 // pred_check
      _
    $region19: #{tpu_custom_call.1} parent=1 // pred_check_branch
      %41 = sbr.rel (0) target = $region21
    $region20: #{tpu_custom_call.1} parent=1 // pred_region
      %42 = dma.done [#allocation6], 512
    $region21: #{tpu_custom_call.1} parent=1 // pred_fallthru
      _
    %v43 = vld [vmem:[#allocation2] sm:$0xff]
    %v44 = vld [vmem:[#allocation2 + $0x8] sm:$0xff]
    %v45 = vld [vmem:[#allocation2 + $0x10] sm:$0xff]
    %v46 = vld [vmem:[#allocation2 + $0x18] sm:$0xff]
    %v47 = vld [vmem:[#allocation2 + $0x20] sm:$0xff]
    %v48 = vld [vmem:[#allocation2 + $0x28] sm:$0xff]
    %v49 = vld [vmem:[#allocation2 + $0x30] sm:$0xff]
    %v50 = vld [vmem:[#allocation2 + $0x38] sm:$0xff]
    %v51 = vld [vmem:[#allocation5] sm:$0xff]
    %v52 = vld [vmem:[#allocation5 + $0x8] sm:$0xff]
    %v53 = vld [vmem:[#allocation5 + $0x10] sm:$0xff]
    %v54 = vld [vmem:[#allocation5 + $0x18] sm:$0xff]
    %v55 = vld [vmem:[%s2] sm:$0x1]
    %v57 = vlaneseq
    %v58 = vshrl.u32 %v57, 7
    %v59 = vsub.s32 0, %v58
    %v60 = vrot.slane %v55, %v59
    %vm62 = vcmask 261120
    %v64 = vsel %vm62, %v43, 0
    %v67 = vsel %vm62, %v44, 0
    %v70 = vsel %vm62, %v45, 0
    %v73 = vsel %vm62, %v46, 0
    %v76 = vsel %vm62, %v47, 0
    %v79 = vsel %vm62, %v48, 0
    %v82 = vsel %vm62, %v49, 0
    %v85 = vsel %vm62, %v50, 0
    %87 = vmatprep.subr.mxu0 0.0
    %88 = vmatpush1.msra.mxu0 %v51
    %89 = vmatprep.subr.mxu0 0.0
    %90 = vmatpush1.msra.mxu0 %v52
    %91 = vmatprep.subr.mxu0 0.0
    %92 = vmatpush1.msra.mxu0 %v53
    %93 = vmatprep.subr.mxu0 0.0
    %94 = vmatpush1.msra.mxu0 %v54
    %95 = vmatprep.subr.mxu0 0.0
    %96 = vmatpush1.msra.mxu0 0.0
    %97 = vmatprep.subr.mxu0 0.0
    %98 = vmatpush1.msra.mxu0 0.0
    %99 = vmatprep.subr.mxu0 0.0
    %100 = vmatpush1.msra.mxu0 0.0
    %101 = vmatprep.subr.mxu0 0.0
    %102 = vmatpush1.msra.mxu0 0.0
    %103 = vmatprep.subr.mxu0 0.0
    %104 = vmatpush1.msra.mxu0 0.0
    %105 = vmatprep.subr.mxu0 0.0
    %106 = vmatpush1.msra.mxu0 0.0
    %107 = vmatprep.subr.mxu0 0.0
    %108 = vmatpush1.msra.mxu0 0.0
    %109 = vmatprep.subr.mxu0 0.0
    %110 = vmatpush1.msra.mxu0 0.0
    %111 = vmatprep.subr.mxu0 0.0
    %112 = vmatpush1.msra.mxu0 0.0
    %113 = vmatprep.subr.mxu0 0.0
    %114 = vmatpush1.msra.mxu0 0.0
    %115 = vmatprep.subr.mxu0 0.0
    %116 = vmatpush1.msra.mxu0 0.0
    %117 = vmatprep.subr.mxu0 0.0
    %118 = vmatpush1.msra.mxu0 0.0
    %119 = vmatprep.subr.mxu0 0.0
    %120 = vmatpush1.msra.mxu0 0.0
    %121 = vmatprep.subr.mxu0 0.0
    %122 = vmatpush1.msra.mxu0 0.0
    %123 = vmatprep.subr.mxu0 0.0
    %124 = vmatpush1.msra.mxu0 0.0
    %125 = vmatprep.subr.mxu0 0.0
    %126 = vmatpush1.msra.mxu0 0.0
    %127 = vmatprep.subr.mxu0 0.0
    %128 = vmatpush1.msra.mxu0 0.0
    %129 = vmatprep.subr.mxu0 0.0
    %130 = vmatpush1.msra.mxu0 0.0
    %131 = vmatprep.subr.mxu0 0.0
    %132 = vmatpush1.msra.mxu0 0.0
    %133 = vmatprep.subr.mxu0 0.0
    %134 = vmatpush1.msra.mxu0 0.0
    %135 = vmatprep.subr.mxu0 0.0
    %136 = vmatpush1.msra.mxu0 0.0
    %137 = vmatprep.subr.mxu0 0.0
    %138 = vmatpush1.msra.mxu0 0.0
    %139 = vmatprep.subr.mxu0 0.0
    %140 = vmatpush1.msra.mxu0 0.0
    %141 = vmatprep.subr.mxu0 0.0
    %142 = vmatpush1.msra.mxu0 0.0
    %143 = vmatprep.subr.mxu0 0.0
    %144 = vmatpush1.msra.mxu0 0.0
    %145 = vmatprep.subr.mxu0 0.0
    %146 = vmatpush1.msra.mxu0 0.0
    %147 = vmatprep.subr.mxu0 0.0
    %148 = vmatpush1.msra.mxu0 0.0
    %149 = vmatprep.subr.mxu0 0.0
    %150 = vmatpush1.msra.mxu0 0.0
    %151 = vmatprep.mubr.f32.mxu0 0.0
    %152 = vmatmul.mubr.f32.gmra.mrb[0].mxu0 %v64
    %v153 = vpop.f32.mrb[0].mxu0
    %v154 = vadd.f32 %v60, %v153
    %v155 = vpop.f32.mrb[0].mxu0
    %156 = vmatprep.mubr.f32.mxu0 0.0
    %157 = vmatmul.mubr.f32.gmra.mrb[0].mxu0 %v67
    %v158 = vpop.f32.mrb[0].mxu0
    %v159 = vadd.f32 %v60, %v158
    %v160 = vpop.f32.mrb[0].mxu0
    %161 = vmatprep.mubr.f32.mxu0 0.0
    %162 = vmatmul.mubr.f32.gmra.mrb[0].mxu0 %v70
    %v163 = vpop.f32.mrb[0].mxu0
    %v164 = vadd.f32 %v60, %v163
    %v165 = vpop.f32.mrb[0].mxu0
    %166 = vmatprep.mubr.f32.mxu0 0.0
    %167 = vmatmul.mubr.f32.gmra.mrb[0].mxu0 %v73
    %v168 = vpop.f32.mrb[0].mxu0
    %v169 = vadd.f32 %v60, %v168
    %v170 = vpop.f32.mrb[0].mxu0
    %171 = vmatprep.mubr.f32.mxu0 0.0
    %172 = vmatmul.mubr.f32.gmra.mrb[0].mxu0 %v76
    %v173 = vpop.f32.mrb[0].mxu0
    %v174 = vadd.f32 %v60, %v173
    %v175 = vpop.f32.mrb[0].mxu0
    %176 = vmatprep.mubr.f32.mxu0 0.0
    %177 = vmatmul.mubr.f32.gmra.mrb[0].mxu0 %v79
    %v178 = vpop.f32.mrb[0].mxu0
    %v179 = vadd.f32 %v60, %v178
    %v180 = vpop.f32.mrb[0].mxu0
    %181 = vmatprep.mubr.f32.mxu0 0.0
    %182 = vmatmul.mubr.f32.gmra.mrb[0].mxu0 %v82
    %v183 = vpop.f32.mrb[0].mxu0
    %v184 = vadd.f32 %v60, %v183
    %v185 = vpop.f32.mrb[0].mxu0
    %186 = vmatprep.mubr.f32.mxu0 0.0
    %187 = vmatmul.mubr.f32.gmra.mrb[0].mxu0 %v85
    %v188 = vpop.f32.mrb[0].mxu0
    %v189 = vadd.f32 %v60, %v188
    %v190 = vpop.f32.mrb[0].mxu0
    %191 = vdwg.mxu0
    %v192 = vsub.f32 0.0, %v154
    %v193 = vsub.f32 0.0, %v159
    %v194 = vsub.f32 0.0, %v164
    %v195 = vsub.f32 0.0, %v169
    %v196 = vsub.f32 0.0, %v174
    %v197 = vsub.f32 0.0, %v179
    %v198 = vsub.f32 0.0, %v184
    %v199 = vsub.f32 0.0, %v189
    %v200 = vmul.f32 %v192, 1.442695
    %v201 = vpow.pop %v200
    %v202 = vmul.f32 %v193, 1.442695
    %v203 = vpow.pop %v202
    %v204 = vmul.f32 %v194, 1.442695
    %v205 = vpow.pop %v204
    %v206 = vmul.f32 %v195, 1.442695
    %v207 = vpow.pop %v206
    %v208 = vmul.f32 %v196, 1.442695
    %v209 = vpow.pop %v208
    %v210 = vmul.f32 %v197, 1.442695
    %v211 = vpow.pop %v210
    %v212 = vmul.f32 %v198, 1.442695
    %v213 = vpow.pop %v212
    %v214 = vmul.f32 %v199, 1.442695
    %v215 = vpow.pop %v214
    %v216 = vsub.f32 1.0, %v201
    %v217 = vsub.f32 1.0, %v203
    %v218 = vsub.f32 1.0, %v205
    %v219 = vsub.f32 1.0, %v207
    %v220 = vsub.f32 1.0, %v209
    %v221 = vsub.f32 1.0, %v211
    %v222 = vsub.f32 1.0, %v213
    %v223 = vsub.f32 1.0, %v215
    %v224 = vmul.f32 %v201, %v201
    %v225 = vmul.f32 %v203, %v203
    %v226 = vmul.f32 %v205, %v205
    %v227 = vmul.f32 %v207, %v207
    %v228 = vmul.f32 %v209, %v209
    %v229 = vmul.f32 %v211, %v211
    %v230 = vmul.f32 %v213, %v213
    %v231 = vmul.f32 %v215, %v215
    %v232 = vadd.f32 %v224, 1.0
    %v233 = vadd.f32 %v225, 1.0
    %v234 = vadd.f32 %v226, 1.0
    %v235 = vadd.f32 %v227, 1.0
    %v236 = vadd.f32 %v228, 1.0
    %v237 = vadd.f32 %v229, 1.0
    %v238 = vadd.f32 %v230, 1.0
    %v239 = vadd.f32 %v231, 1.0
    %v240 = vrcp.pop %v232
    %v241 = vrcp.pop %v233
    %v242 = vrcp.pop %v234
    %v243 = vrcp.pop %v235
    %v244 = vrcp.pop %v236
    %v245 = vrcp.pop %v237
    %v246 = vrcp.pop %v238
    %v247 = vrcp.pop %v239
    %v248 = vmul.f32 %v216, %v240
    %v249 = vmul.f32 %v217, %v241
    %v250 = vmul.f32 %v218, %v242
    %v251 = vmul.f32 %v219, %v243
    %v252 = vmul.f32 %v220, %v244
    %v253 = vmul.f32 %v221, %v245
    %v254 = vmul.f32 %v222, %v246
    %v255 = vmul.f32 %v223, %v247
    %v256 = vrot.slane %v248, 4
    %v257 = vadd.f32 %v248, %v256
    %v258 = vrot.slane %v257, 2
    %v259 = vadd.f32 %v257, %v258
    %v260 = vrot.slane %v259, 1
    %v261 = vadd.f32 %v259, %v260
    %v262 = vrot.slane %v249, 4
    %v263 = vadd.f32 %v249, %v262
    %v264 = vrot.slane %v263, 2
    %v265 = vadd.f32 %v263, %v264
    %v266 = vrot.slane %v265, 1
    %v267 = vadd.f32 %v265, %v266
    %v268 = vrot.slane %v250, 4
    %v269 = vadd.f32 %v250, %v268
    %v270 = vrot.slane %v269, 2
    %v271 = vadd.f32 %v269, %v270
    %v272 = vrot.slane %v271, 1
    %v273 = vadd.f32 %v271, %v272
    %v274 = vrot.slane %v251, 4
    %v275 = vadd.f32 %v251, %v274
    %v276 = vrot.slane %v275, 2
    %v277 = vadd.f32 %v275, %v276
    %v278 = vrot.slane %v277, 1
    %v279 = vadd.f32 %v277, %v278
    %v280 = vrot.slane %v252, 4
    %v281 = vadd.f32 %v252, %v280
    %v282 = vrot.slane %v281, 2
    %v283 = vadd.f32 %v281, %v282
    %v284 = vrot.slane %v283, 1
    %v285 = vadd.f32 %v283, %v284
    %v286 = vrot.slane %v253, 4
    %v287 = vadd.f32 %v253, %v286
    %v288 = vrot.slane %v287, 2
    %v289 = vadd.f32 %v287, %v288
    %v290 = vrot.slane %v289, 1
    %v291 = vadd.f32 %v289, %v290
    %v292 = vrot.slane %v254, 4
    %v293 = vadd.f32 %v254, %v292
    %v294 = vrot.slane %v293, 2
    %v295 = vadd.f32 %v293, %v294
    %v296 = vrot.slane %v295, 1
    %v297 = vadd.f32 %v295, %v296
    %v298 = vrot.slane %v255, 4
    %v299 = vadd.f32 %v255, %v298
    %v300 = vrot.slane %v299, 2
    %v301 = vadd.f32 %v299, %v300
    %v302 = vrot.slane %v301, 1
    %v303 = vadd.f32 %v301, %v302
    %v304 = vtanh.pop %v261
    %v305 = vtanh.pop %v267
    %v306 = vtanh.pop %v273
    %v307 = vtanh.pop %v279
    %v308 = vtanh.pop %v285
    %v309 = vtanh.pop %v291
    %v310 = vtanh.pop %v297
    %v311 = vtanh.pop %v303
    %vm320 = vcmask 1041409
    %v321 = vsel %vm320, %v305, %v304
    %vm322 = vcmask 1042434
    %v323 = vsel %vm322, %v306, %v321
    %vm324 = vcmask 1043459
    %v325 = vsel %vm324, %v307, %v323
    %vm326 = vcmask 1044484
    %v327 = vsel %vm326, %v308, %v325
    %vm328 = vcmask 1045509
    %v329 = vsel %vm328, %v309, %v327
    %vm330 = vcmask 1046534
    %v331 = vsel %vm330, %v310, %v329
    %vm332 = vcmask 1047559
    %v333 = vsel %vm332, %v311, %v331
    %335 = vst [vmem:[#allocation7] sm:$0xff] %v333
    // Predicated region
    $region22: #{tpu_custom_call.1} parent=1 // pred_check
      _
    $region23: #{tpu_custom_call.1} parent=1 // pred_check_branch
      %337 = sbr.rel (0) target = $region25
    $region24: #{tpu_custom_call.1} parent=1 // pred_region
      %s339 = ssub.s32 128, 128
      %340 = vsyncadd [#allocation4], %s339
      %s342 = sshll.u32 [#allocation7], 4
      %s343 = int_to_ptr.vmem [resolvable:$true] %s342
      %345 = dma.vmem_to_hbm [thread:$0]  %s343, 128, %s3, [#allocation4]
    $region25: #{tpu_custom_call.1} parent=1 // pred_fallthru
      _
    // Predicated region
    $region26: #{tpu_custom_call.1} parent=1 // pred_check
      _
    $region27: #{tpu_custom_call.1} parent=1 // pred_check_branch
      %347 = sbr.rel (0) target = $region29
    $region28: #{tpu_custom_call.1} parent=1 // pred_region
      %348 = dma.done [#allocation4], 128
    $region29: #{tpu_custom_call.1} parent=1 // pred_fallthru
      _
    %349 = vsyncpa [#allocation3], 1
    %350 = vsyncpa [#allocation6], 1
    %351 = vsyncpa [#allocation4], 1

</llo_original>
